<compile_context>
chip_gen: v7x
topology: tpu7x:2x2x1
jax: 0.10.0
libtpu: 0.0.40
codegen_flags: <defaults>
</compile_context>

<pallas_src>
import functools
import math

import jax
import jax.numpy as jnp
from jax.experimental import pallas as pl
from jax.experimental.pallas import tpu as pltpu


def _round_up(v, m):
    return (v + m - 1) // m * m


def _make_kernel(compute_dtype):
    def kernel(x_ref, w1_ref, b1_ref, w2_ref, b2_ref, out_ref):
        # h1 = relu(x @ W1 + b1)   — MXU matmul with f32 accumulation,
        # bias-add / ReLU stay in f32 (cheap on the VPU, correct on v5e too).
        x = x_ref[...].astype(compute_dtype)
        w1 = w1_ref[...].astype(compute_dtype)
        h1 = jnp.dot(x, w1, preferred_element_type=jnp.float32)
        h1 = jnp.maximum(h1 + b1_ref[...], 0.0)
        # out = relu(h1 @ W2 + b2)
        w2 = w2_ref[...].astype(compute_dtype)
        h2 = jnp.dot(h1.astype(compute_dtype), w2,
                     preferred_element_type=jnp.float32)
        out_ref[...] = jnp.maximum(h2 + b2_ref[...], 0.0).astype(out_ref.dtype)
        # TODO(synk): nn.Dropout is identity in eval mode; training-mode dropout
        # (pltpu.prng_seed + pltpu.prng_random_bits mask, scaled by 1/(1-p)) omitted.
    return kernel


def _choose_row_tile(n, max_row_tile):
    """Pick a row tile: big (amortize per-grid-step overhead), tile count even
    (balanced split across v7x's two TensorCores), rows a multiple of 8."""
    num = max(1, math.ceil(n / max_row_tile))
    if num == 1 and n >= 256:
        num = 2                      # split moderately-sized N for dual-TC v7x
    if num > 1 and num % 2 == 1:
        num += 1                     # even tile count -> balanced "parallel" axis
    return _round_up(math.ceil(n / num), 8)


@functools.partial(jax.jit, static_argnames=("max_row_tile", "compute_dtype"))
def gnn_forward(x, w1, b1, w2, b2, *, max_row_tile=512,
                compute_dtype=jnp.bfloat16):
    """relu(relu(x @ w1 + b1) @ w2 + b2), fused in one Pallas TPU kernel.

    x:  [N, in_dim]; w1: [in_dim, n_hid//2]; b1: [n_hid//2]
    w2: [n_hid//2, n_hid]; b2: [n_hid]  ->  [N, n_hid] float32
    """
    n, d_in = x.shape
    d_h1 = w1.shape[1]
    d_h2 = w2.shape[1]

    x = x.astype(jnp.float32)
    w1 = w1.astype(jnp.float32)
    w2 = w2.astype(jnp.float32)
    b1 = b1.reshape(1, d_h1).astype(jnp.float32)
    b2 = b2.reshape(1, d_h2).astype(jnp.float32)

    kernel = _make_kernel(compute_dtype)
    out_shape = jax.ShapeDtypeStruct((n, d_h2), jnp.float32)

    cost = pl.CostEstimate(
        flops=2 * n * (d_in * d_h1 + d_h1 * d_h2),
        transcendentals=0,
        bytes_accessed=4 * (n * d_in + d_in * d_h1 + d_h1 + d_h1 * d_h2
                            + d_h2 + n * d_h2),
    )

    row_tile = _choose_row_tile(n, max_row_tile)
    num_tiles = pl.cdiv(n, row_tile)

    if num_tiles == 1:
        # Single block: grid-less call, every operand pinned in VMEM (no
        # pointless double-buffering of a grid=(1,) full-block pattern).
        vmem = pl.BlockSpec(memory_space=pltpu.MemorySpace.VMEM)
        return pl.pallas_call(
            kernel,
            out_shape=out_shape,
            in_specs=[vmem] * 5,
            out_specs=vmem,
            cost_estimate=cost,
        )(x, w1, b1, w2, b2)

    # Row-tiled grid over nodes; the tiny weights/biases are revisited full
    # blocks.  Feature dims are the full (unpadded) array dims; tail-block
    # rows beyond N are garbage on read and dropped on write (rows are
    # independent — do NOT keep this pattern if a cross-row reduction is added).
    return pl.pallas_call(
        kernel,
        out_shape=out_shape,
        grid=(num_tiles,),
        in_specs=[
            pl.BlockSpec((row_tile, d_in), lambda i: (i, 0)),
            pl.BlockSpec((d_in, d_h1), lambda i: (0, 0)),
            pl.BlockSpec((1, d_h1), lambda i: (0, 0)),
            pl.BlockSpec((d_h1, d_h2), lambda i: (0, 0)),
            pl.BlockSpec((1, d_h2), lambda i: (0, 0)),
        ],
        out_specs=pl.BlockSpec((row_tile, d_h2), lambda i: (i, 0)),
        compiler_params=pltpu.CompilerParams(
            dimension_semantics=("parallel",)),
        cost_estimate=cost,
    )(x, w1, b1, w2, b2)


def _reference(x, w1, b1, w2, b2):
    h1 = jnp.maximum(jnp.dot(x, w1) + b1, 0.0)
    h2 = jnp.maximum(jnp.dot(h1, w2) + b2, 0.0)
    return h2  # eval-mode dropout is identity


def _linear_init(key, fan_in, fan_out):
    # matches torch.nn.Linear default init scale (uniform(-1/sqrt(fan_in), ...))
    kw, kb = jax.random.split(key)
    bound = 1.0 / math.sqrt(fan_in)
    w = jax.random.uniform(kw, (fan_in, fan_out), jnp.float32, -bound, bound)
    b = jax.random.uniform(kb, (fan_out,), jnp.float32, -bound, bound)
    return w, b


if __name__ == "__main__":
    N, IN_DIM, N_HID = 300, 96, 64          # n_hid // 2 == 32
    HID_HALF = N_HID // 2

    key = jax.random.PRNGKey(0)
    kx, k1, k2 = jax.random.split(key, 3)

    x = jax.random.normal(kx, (N, IN_DIM), dtype=jnp.float32)
    w1, b1 = _linear_init(k1, IN_DIM, HID_HALF)
    w2, b2 = _linear_init(k2, HID_HALF, N_HID)

    ref = _reference(x, w1, b1, w2, b2)

    # f32 MXU path (bit-faithful to the PyTorch module) — tight tolerance.
    out_f32 = gnn_forward(x, w1, b1, w2, b2, compute_dtype=jnp.float32)
    out_f32 = jax.block_until_ready(out_f32)
    assert out_f32.shape == (N, N_HID)
    assert jnp.allclose(out_f32, ref, atol=1e-4, rtol=1e-4)
    assert jnp.all(out_f32 >= 0.0)  # final ReLU

    # Default fast path: bf16 MXU operands with f32 accumulation (v6e/v7x).
    out_bf16 = gnn_forward(x, w1, b1, w2, b2)
    out_bf16 = jax.block_until_ready(out_bf16)
    assert out_bf16.shape == (N, N_HID)
    assert jnp.allclose(out_bf16, ref, atol=1e-1, rtol=1e-1)  # bf16 operand rounding

    # Also exercise the grid-less single-block (small N) path.
    out_small = gnn_forward(x[:64], w1, b1, w2, b2, compute_dtype=jnp.float32)
    out_small = jax.block_until_ready(out_small)
    assert jnp.allclose(out_small, ref[:64], atol=1e-4, rtol=1e-4)

    print("KERNEL_OK")
</pallas_src>

<mosaic_0001>
module attributes {stable_mosaic.version = 11 : i64} {
  func.func @kernel(%arg0: i32, %arg1: memref<152x96xf32, #tpu.memory_space<vmem>>, %arg2: memref<96x32xf32, #tpu.memory_space<vmem>>, %arg3: memref<1x32xf32, #tpu.memory_space<vmem>>, %arg4: memref<32x64xf32, #tpu.memory_space<vmem>>, %arg5: memref<1x64xf32, #tpu.memory_space<vmem>>, %arg6: memref<152x64xf32, #tpu.memory_space<vmem>>) attributes {dimension_semantics = [#tpu.dimension_semantics<parallel>], iteration_bounds = array<i64: 2>, scalar_prefetch = 0 : i64, scratch_operands = 0 : i64, tpu.core_type = #tpu.core_type<tc>, window_params = [{transform_indices = @transform_0, window_bounds = array<i64: 152, 96>}, {pipeline_mode = #tpu.pipeline_mode<synchronous>, transform_indices = @transform_1, window_bounds = array<i64: 96, 32>}, {pipeline_mode = #tpu.pipeline_mode<synchronous>, transform_indices = @transform_2, window_bounds = array<i64: 1, 32>}, {pipeline_mode = #tpu.pipeline_mode<synchronous>, transform_indices = @transform_3, window_bounds = array<i64: 32, 64>}, {pipeline_mode = #tpu.pipeline_mode<synchronous>, transform_indices = @transform_4, window_bounds = array<i64: 1, 64>}, {transform_indices = @transform_5, window_bounds = array<i64: 152, 64>}]} {
    %c0 = arith.constant 0 : index
    %c0_0 = arith.constant 0 : index
    %0 = vector.load %arg1[%c0, %c0_0] : memref<152x96xf32, #tpu.memory_space<vmem>>, vector<152x96xf32>
    %c0_1 = arith.constant 0 : index
    %c0_2 = arith.constant 0 : index
    %1 = vector.load %arg2[%c0_1, %c0_2] : memref<96x32xf32, #tpu.memory_space<vmem>>, vector<96x32xf32>
    %cst = arith.constant dense<0.000000e+00> : vector<152x32xf32>
    %2 = tpu.matmul %0, %1, %cst {dimension_numbers = #tpu.dot_dimension_numbers<[1], [0], [0], [1], [0, 0, 1, 1], [], []>} : vector<152x96xf32>, vector<96x32xf32>, vector<152x32xf32> -> vector<152x32xf32>
    %c0_3 = arith.constant 0 : index
    %c0_4 = arith.constant 0 : index
    %3 = vector.load %arg3[%c0_3, %c0_4] : memref<1x32xf32, #tpu.memory_space<vmem>>, vector<1x32xf32>
    %4 = vector.broadcast %3 : vector<1x32xf32> to vector<152x32xf32>
    %5 = arith.addf %2, %4 : vector<152x32xf32>
    %cst_5 = arith.constant 0.000000e+00 : f32
    %6 = vector.broadcast %cst_5 : f32 to vector<152x32xf32>
    %7 = arith.maximumf %5, %6 : vector<152x32xf32>
    %c0_6 = arith.constant 0 : index
    %c0_7 = arith.constant 0 : index
    %8 = vector.load %arg4[%c0_6, %c0_7] : memref<32x64xf32, #tpu.memory_space<vmem>>, vector<32x64xf32>
    %cst_8 = arith.constant dense<0.000000e+00> : vector<152x64xf32>
    %9 = tpu.matmul %7, %8, %cst_8 {dimension_numbers = #tpu.dot_dimension_numbers<[1], [0], [0], [1], [0, 0, 1, 1], [], []>} : vector<152x32xf32>, vector<32x64xf32>, vector<152x64xf32> -> vector<152x64xf32>
    %c0_9 = arith.constant 0 : index
    %c0_10 = arith.constant 0 : index
    %10 = vector.load %arg5[%c0_9, %c0_10] : memref<1x64xf32, #tpu.memory_space<vmem>>, vector<1x64xf32>
    %11 = vector.broadcast %10 : vector<1x64xf32> to vector<152x64xf32>
    %12 = arith.addf %9, %11 : vector<152x64xf32>
    %cst_11 = arith.constant 0.000000e+00 : f32
    %13 = vector.broadcast %cst_11 : f32 to vector<152x64xf32>
    %14 = arith.maximumf %12, %13 : vector<152x64xf32>
    %c0_12 = arith.constant 0 : index
    %c0_13 = arith.constant 0 : index
    %15 = vector.load %arg6[%c0_12, %c0_13] : memref<152x64xf32, #tpu.memory_space<vmem>>, vector<152x64xf32>
    tpu.vector_store %arg6[%c0_12, %c0_13], %14 {strides = array<i32>} : memref<152x64xf32, #tpu.memory_space<vmem>>, vector<152x64xf32>,
    return
  }
  func.func @transform_0(%arg0: i32) -> (i32, i32) {
    %c0_i32 = arith.constant 0 : i32
    %c0_i32_0 = arith.constant 0 : i32
    return %arg0, %c0_i32 : i32, i32
  }
  func.func @transform_1(%arg0: i32) -> (i32, i32) {
    %c0_i32 = arith.constant 0 : i32
    %c0_i32_0 = arith.constant 0 : i32
    %c0_i32_1 = arith.constant 0 : i32
    return %c0_i32, %c0_i32_0 : i32, i32
  }
  func.func @transform_2(%arg0: i32) -> (i32, i32) {
    %c0_i32 = arith.constant 0 : i32
    %c0_i32_0 = arith.constant 0 : i32
    %c0_i32_1 = arith.constant 0 : i32
    return %c0_i32, %c0_i32_0 : i32, i32
  }
  func.func @transform_3(%arg0: i32) -> (i32, i32) {
    %c0_i32 = arith.constant 0 : i32
    %c0_i32_0 = arith.constant 0 : i32
    %c0_i32_1 = arith.constant 0 : i32
    return %c0_i32, %c0_i32_0 : i32, i32
  }
  func.func @transform_4(%arg0: i32) -> (i32, i32) {
    %c0_i32 = arith.constant 0 : i32
    %c0_i32_0 = arith.constant 0 : i32
    %c0_i32_1 = arith.constant 0 : i32
    return %c0_i32, %c0_i32_0 : i32, i32
  }
  func.func @transform_5(%arg0: i32) -> (i32, i32) {
    %c0_i32 = arith.constant 0 : i32
    %c0_i32_0 = arith.constant 0 : i32
    return %arg0, %c0_i32 : i32, i32
  }
}

</mosaic_0001>

<llo_original>
// kernel: gnn_forward.1
$region0: #{gnn_forward.1}
  #allocation0 [shape = 'u32[]', space=smem, size = 0x4, offset = 0x4, fixed_abs, tag = 'smem constant byte address 0x4 - core index']
  #allocation1 [shape = 'u32[144,128]{1,0:T(1,128)}', space=vmem, size = 0x12000, scoped, tag = 'internal scratch']
  %s0 = inlined_call_operand.vmem [shape: f32[300,96], index: 0, kind: input, shape index: {}]
  %s1 = inlined_call_operand.vmem [shape: f32[96,32], index: 1, kind: input, shape index: {}]
  %s2 = inlined_call_operand.vmem [shape: f32[1,32], index: 2, kind: input, shape index: {}]
  %s3 = inlined_call_operand.vmem [shape: f32[32,64], index: 3, kind: input, shape index: {}]
  %s4 = inlined_call_operand.vmem [shape: f32[1,64], index: 4, kind: input, shape index: {}]
  %s5 = inlined_call_operand.vmem [shape: f32[300,64], index: 5, kind: output, shape index: {}]
  %s6 = sld [smem:[#allocation0]]
  $region53: #{gnn_forward.1} parent=0
    _
  %s8 = ssub.s32 1, %s6
  %s9 = scalar_select 0, %s8, %s6
  loop: start=0, step=1, limit=4
  $region2: #{gnn_forward.1} parent=0 // loop_pre_header
    _
  $region3: #{gnn_forward.1} parent=0 // loop_header
    %s11 = sphi 0, %s15
    %p12 = scmp.ge.s32.totalorder %s11, 4
    %s21 = sphi 0, %s23
    %s24 = sphi 0, %s21
    %s25 = sphi 0, %s24
    %s41 = sphi 0, %s25
    %s45 = sphi 0, %s45
    %s47 = sphi 0, %s45
    %s48 = sphi 0, %s47
    %s62 = sphi 0, %s48
    %s66 = sphi 0, %s66
    %s68 = sphi 0, %s66
    %s69 = sphi 0, %s68
    %s83 = sphi 0, %s69
    %s87 = sphi 0, %s87
    %s89 = sphi 0, %s87
    %s90 = sphi 0, %s89
    %s104 = sphi 0, %s90
    %s108 = sphi 0, %s108
    %s110 = sphi 0, %s108
    %s111 = sphi 0, %s110
    %s125 = sphi 0, %s111
    %s131 = sphi 0, %s133
    %s134 = sphi 0, %s131
    %s135 = sphi 0, %s134
    %s151 = sphi 0, %s135
  $region4: #{gnn_forward.1} parent=0 // loop_header_branch
    %14 = sbr.rel (%p12) target = $region8
  $region5: #{gnn_forward.1} parent=0 // loop_body
    %s16 = ssub.s32 %s11, 1
    %s17 = ssub.s32 %s11, 2
    %s18 = sadd.s32 %s11, 1
    %s19 = ssub.s32 %s11, %s18
    %p20 = scmp.eq.s32.totalorder %s19, 0
    %s22 = sadd.s32 %s21, 1
    %s23 = scalar_select %p20, %s21, %s22
    %p26 = pneg %p20
    %p27 = scmp.eq.s32.totalorder %s11, 1
    %p28 = por %p26, %p27
    %p29 = scmp.ne.s32.totalorder %s21, %s24
    %p30 = scmp.eq.s32.totalorder %s11, 0
    %p31 = por %p29, %p30
    %p32 = scmp.ne.s32.totalorder %s21, %s24
    %p33 = scmp.eq.s32.totalorder %s16, 1
    %p34 = por %p32, %p33
    %p35 = scmp.ne.s32.totalorder %s24, %s25
    %p36 = scmp.eq.s32.totalorder %s16, 0
    %p37 = por %p35, %p36
    %p38 = scmp.ne.s32.totalorder %s24, %s25
    %p39 = scmp.eq.s32.totalorder %s17, 1
    %p40 = por %p38, %p39
    %p42 = scmp.ne.s32.totalorder %s25, %s41
    %p43 = scmp.eq.s32.totalorder %s17, 0
    %p44 = por %p42, %p43
    %s46 = sadd.s32 %s45, 1
    %p49 = scmp.eq.s32.totalorder %s11, 1
    %p50 = scmp.ne.s32.totalorder %s45, %s47
    %p51 = scmp.eq.s32.totalorder %s11, 0
    %p52 = por %p50, %p51
    %p53 = scmp.ne.s32.totalorder %s45, %s47
    %p54 = scmp.eq.s32.totalorder %s16, 1
    %p55 = por %p53, %p54
    %p56 = scmp.ne.s32.totalorder %s47, %s48
    %p57 = scmp.eq.s32.totalorder %s16, 0
    %p58 = por %p56, %p57
    %p59 = scmp.ne.s32.totalorder %s47, %s48
    %p60 = scmp.eq.s32.totalorder %s17, 1
    %p61 = por %p59, %p60
    %p63 = scmp.ne.s32.totalorder %s48, %s62
    %p64 = scmp.eq.s32.totalorder %s17, 0
    %p65 = por %p63, %p64
    %s67 = sadd.s32 %s66, 1
    %p70 = scmp.eq.s32.totalorder %s11, 1
    %p71 = scmp.ne.s32.totalorder %s66, %s68
    %p72 = scmp.eq.s32.totalorder %s11, 0
    %p73 = por %p71, %p72
    %p74 = scmp.ne.s32.totalorder %s66, %s68
    %p75 = scmp.eq.s32.totalorder %s16, 1
    %p76 = por %p74, %p75
    %p77 = scmp.ne.s32.totalorder %s68, %s69
    %p78 = scmp.eq.s32.totalorder %s16, 0
    %p79 = por %p77, %p78
    %p80 = scmp.ne.s32.totalorder %s68, %s69
    %p81 = scmp.eq.s32.totalorder %s17, 1
    %p82 = por %p80, %p81
    %p84 = scmp.ne.s32.totalorder %s69, %s83
    %p85 = scmp.eq.s32.totalorder %s17, 0
    %p86 = por %p84, %p85
    %s88 = sadd.s32 %s87, 1
    %p91 = scmp.eq.s32.totalorder %s11, 1
    %p92 = scmp.ne.s32.totalorder %s87, %s89
    %p93 = scmp.eq.s32.totalorder %s11, 0
    %p94 = por %p92, %p93
    %p95 = scmp.ne.s32.totalorder %s87, %s89
    %p96 = scmp.eq.s32.totalorder %s16, 1
    %p97 = por %p95, %p96
    %p98 = scmp.ne.s32.totalorder %s89, %s90
    %p99 = scmp.eq.s32.totalorder %s16, 0
    %p100 = por %p98, %p99
    %p101 = scmp.ne.s32.totalorder %s89, %s90
    %p102 = scmp.eq.s32.totalorder %s17, 1
    %p103 = por %p101, %p102
    %p105 = scmp.ne.s32.totalorder %s90, %s104
    %p106 = scmp.eq.s32.totalorder %s17, 0
    %p107 = por %p105, %p106
    %s109 = sadd.s32 %s108, 1
    %p112 = scmp.eq.s32.totalorder %s11, 1
    %p113 = scmp.ne.s32.totalorder %s108, %s110
    %p114 = scmp.eq.s32.totalorder %s11, 0
    %p115 = por %p113, %p114
    %p116 = scmp.ne.s32.totalorder %s108, %s110
    %p117 = scmp.eq.s32.totalorder %s16, 1
    %p118 = por %p116, %p117
    %p119 = scmp.ne.s32.totalorder %s110, %s111
    %p120 = scmp.eq.s32.totalorder %s16, 0
    %p121 = por %p119, %p120
    %p122 = scmp.ne.s32.totalorder %s110, %s111
    %p123 = scmp.eq.s32.totalorder %s17, 1
    %p124 = por %p122, %p123
    %p126 = scmp.ne.s32.totalorder %s111, %s125
    %p127 = scmp.eq.s32.totalorder %s17, 0
    %p128 = por %p126, %p127
    %s129 = ssub.s32 %s11, %s18
    %p130 = scmp.eq.s32.totalorder %s129, 0
    %s132 = sadd.s32 %s131, 1
    %s133 = scalar_select %p130, %s131, %s132
    %p136 = pneg %p130
    %p137 = scmp.eq.s32.totalorder %s11, 1
    %p138 = por %p136, %p137
    %p139 = scmp.ne.s32.totalorder %s131, %s134
    %p140 = scmp.eq.s32.totalorder %s11, 0
    %p141 = por %p139, %p140
    %p142 = scmp.ne.s32.totalorder %s131, %s134
    %p143 = scmp.eq.s32.totalorder %s16, 1
    %p144 = por %p142, %p143
    %p145 = scmp.ne.s32.totalorder %s134, %s135
    %p146 = scmp.eq.s32.totalorder %s16, 0
    %p147 = por %p145, %p146
    %p148 = scmp.ne.s32.totalorder %s134, %s135
    %p149 = scmp.eq.s32.totalorder %s17, 1
    %p150 = por %p148, %p149
    %p152 = scmp.ne.s32.totalorder %s135, %s151
    %p153 = scmp.eq.s32.totalorder %s17, 0
    %p154 = por %p152, %p153
    %p155 = scmp.le.s32.totalorder 1, %s11
    %p156 = scmp.lt.s32.totalorder %s11, 3
    %p157 = pnand %p155, %p156
    %p158 = pneg %p157
    // Predicated region
    $region9: #{gnn_forward.1} parent=5 // pred_check
      _
    $region10: #{gnn_forward.1} parent=5 // pred_check_branch
      %160 = sbr.rel (%p157) target = $region12
    $region11: #{gnn_forward.1} parent=5 // pred_region
      %s161 = ssub.s32 %s11, 1
      // Predicated region
      $region13: #{gnn_forward.1} parent=11 // pred_check
        %p162 = pneg %p58
      $region14: #{gnn_forward.1} parent=11 // pred_check_branch
        %164 = sbr.rel (%p162) target = $region16
      $region15: #{gnn_forward.1} parent=11 // pred_region
        _
      $region16: #{gnn_forward.1} parent=11 // pred_fallthru
        _
      // Predicated region
      $region17: #{gnn_forward.1} parent=11 // pred_check
        %p165 = pneg %p79
      $region18: #{gnn_forward.1} parent=11 // pred_check_branch
        %167 = sbr.rel (%p165) target = $region20
      $region19: #{gnn_forward.1} parent=11 // pred_region
        _
      $region20: #{gnn_forward.1} parent=11 // pred_fallthru
        _
      // Predicated region
      $region21: #{gnn_forward.1} parent=11 // pred_check
        %p168 = pneg %p100
      $region22: #{gnn_forward.1} parent=11 // pred_check_branch
        %170 = sbr.rel (%p168) target = $region24
      $region23: #{gnn_forward.1} parent=11 // pred_region
        _
      $region24: #{gnn_forward.1} parent=11 // pred_fallthru
        _
      // Predicated region
      $region25: #{gnn_forward.1} parent=11 // pred_check
        %p171 = pneg %p121
      $region26: #{gnn_forward.1} parent=11 // pred_check_branch
        %173 = sbr.rel (%p171) target = $region28
      $region27: #{gnn_forward.1} parent=11 // pred_region
        _
      $region28: #{gnn_forward.1} parent=11 // pred_fallthru
        _
    $region12: #{gnn_forward.1} parent=5 // pred_fallthru
      _
    %p174 = scmp.lt.s32.totalorder %s11, 2
    // Predicated region
    $region29: #{gnn_forward.1} parent=5 // pred_check
      %p175 = pneg %p174
    $region30: #{gnn_forward.1} parent=5 // pred_check_branch
      %177 = sbr.rel (%p175) target = $region32
    $region31: #{gnn_forward.1} parent=5 // pred_region
      // Predicated region
      $region33: #{gnn_forward.1} parent=31 // pred_check
        %p178 = pneg %p31
      $region34: #{gnn_forward.1} parent=31 // pred_check_branch
        %180 = sbr.rel (%p178) target = $region36
      $region35: #{gnn_forward.1} parent=31 // pred_region
        %s181 = smul.u32 19, %s11
        %p182 = scmp.lt.s32.totalorder %s181, 37
        %s183 = scalar_select %p182, %s181, 37
        %s184 = smul.addr %s183, 8
        %s185 = scalar_lea.vmem %s0, %s184
        %s186 = smul.u32 19, %s11
      $region36: #{gnn_forward.1} parent=31 // pred_fallthru
        _
    $region32: #{gnn_forward.1} parent=5 // pred_fallthru
      _
    %p187 = scmp.le.s32.totalorder 1, %s11
    %p188 = scmp.lt.s32.totalorder %s11, 3
    %p189 = pnand %p187, %p188
    %p190 = pneg %p189
    // Predicated region
    $region37: #{gnn_forward.1} parent=5 // pred_check
      _
    $region38: #{gnn_forward.1} parent=5 // pred_check_branch
      %192 = sbr.rel (%p189) target = $region40
    $region39: #{gnn_forward.1} parent=5 // pred_region
      %s193 = ssub.s32 %s11, 1
      %s194 = smul.u32 19, %s16
      %p195 = scmp.lt.s32.totalorder %s194, 37
      %s196 = scalar_select %p195, %s194, 37
      %s197 = smul.addr %s196, 8
      %s198 = scalar_lea.vmem %s0, %s197
      %p199 = pneg %p37
      %p200 = pneg %p34
      %p201 = pneg %p58
      %p202 = pneg %p55
      %p203 = pneg %p79
      %p204 = pneg %p76
      %p205 = pneg %p100
      %p206 = pneg %p97
      %p207 = pneg %p121
      %p208 = pneg %p118
      %p209 = pneg %p147
      %p210 = pneg %p144
      %s211 = smul.u32 19, %s16
      %p212 = scmp.lt.s32.totalorder %s211, 37
      %s213 = scalar_select %p212, %s211, 37
      %s214 = smul.addr %s213, 8
      %s215 = scalar_lea.vmem %s5, %s214
      %s216 = smul.u32 19, %s16
      %p217 = scmp.lt.s32.totalorder %s216, 37
      %s218 = scalar_select %p217, %s216, 37
      %s219 = smul.addr %s218, 8
      %s220 = scalar_lea.vmem %s0, %s219
      %s221 = smul.u32 19, %s16
      %s222 = smul.u32 19, %s16
      %p223 = scmp.lt.s32.totalorder %s222, 37
      %s224 = scalar_select %p223, %s222, 37
      %s225 = smul.addr %s224, 8
      %s226 = scalar_lea.vmem %s5, %s225
      %s227 = smul.u32 19, %s16
      %v228 = vld [vmem:[%s220] sm:$0xff]
      %v229 = vld [vmem:[%s220 + $0x8] sm:$0xff]
      %v230 = vld [vmem:[%s220 + $0x10] sm:$0xff]
      %v231 = vld [vmem:[%s220 + $0x18] sm:$0xff]
      %v232 = vld [vmem:[%s220 + $0x20] sm:$0xff]
      %v233 = vld [vmem:[%s220 + $0x28] sm:$0xff]
      %v234 = vld [vmem:[%s220 + $0x30] sm:$0xff]
      %v235 = vld [vmem:[%s220 + $0x38] sm:$0xff]
      %v236 = vld [vmem:[%s220 + $0x40] sm:$0xff]
      %v237 = vld [vmem:[%s220 + $0x48] sm:$0xff]
      %v238 = vld [vmem:[%s220 + $0x50] sm:$0xff]
      %v239 = vld [vmem:[%s220 + $0x58] sm:$0xff]
      %v240 = vld [vmem:[%s220 + $0x60] sm:$0xff]
      %v241 = vld [vmem:[%s220 + $0x68] sm:$0xff]
      %v242 = vld [vmem:[%s220 + $0x70] sm:$0xff]
      %v243 = vld [vmem:[%s220 + $0x78] sm:$0xff]
      %v244 = vld [vmem:[%s220 + $0x80] sm:$0xff]
      %v245 = vld [vmem:[%s220 + $0x88] sm:$0xff]
      %v246 = vld [vmem:[%s220 + $0x90] sm:$0xff]
      %v247 = vld [vmem:[%s1] sm:$0xff]
      %v248 = vld [vmem:[%s1 + $0x8] sm:$0xff]
      %v249 = vld [vmem:[%s1 + $0x10] sm:$0xff]
      %v250 = vld [vmem:[%s1 + $0x18] sm:$0xff]
      %v251 = vld [vmem:[%s1 + $0x20] sm:$0xff]
      %v252 = vld [vmem:[%s1 + $0x28] sm:$0xff]
      %v253 = vld [vmem:[%s1 + $0x30] sm:$0xff]
      %v254 = vld [vmem:[%s1 + $0x38] sm:$0xff]
      %v255 = vld [vmem:[%s1 + $0x40] sm:$0xff]
      %v256 = vld [vmem:[%s1 + $0x48] sm:$0xff]
      %v257 = vld [vmem:[%s1 + $0x50] sm:$0xff]
      %v258 = vld [vmem:[%s1 + $0x58] sm:$0xff]
      %v259 = vld [vmem:[%s2] sm:$0x1]
      %v261 = vlaneseq
      %v262 = vshrl.u32 %v261, 7
      %v263 = vsub.s32 0, %v262
      %v264 = vrot.slane %v259, %v263
      %vm266 = vcmask 785408
      %v268 = vsel %vm266, %v228, 0
      %v271 = vsel %vm266, %v229, 0
      %v274 = vsel %vm266, %v230, 0
      %v277 = vsel %vm266, %v231, 0
      %v280 = vsel %vm266, %v232, 0
      %v283 = vsel %vm266, %v233, 0
      %v286 = vsel %vm266, %v234, 0
      %v289 = vsel %vm266, %v235, 0
      %v292 = vsel %vm266, %v236, 0
      %v295 = vsel %vm266, %v237, 0
      %v298 = vsel %vm266, %v238, 0
      %v301 = vsel %vm266, %v239, 0
      %v304 = vsel %vm266, %v240, 0
      %v307 = vsel %vm266, %v241, 0
      %v310 = vsel %vm266, %v242, 0
      %v313 = vsel %vm266, %v243, 0
      %v316 = vsel %vm266, %v244, 0
      %v319 = vsel %vm266, %v245, 0
      %v322 = vsel %vm266, %v246, 0
      %324 = vmatprep.subr.mxu0 0.0
      %325 = vmatpush1.msra.mxu0 %v247
      %326 = vmatprep.subr.mxu0 0.0
      %327 = vmatpush1.msra.mxu0 %v248
      %328 = vmatprep.subr.mxu0 0.0
      %329 = vmatpush1.msra.mxu0 %v249
      %330 = vmatprep.subr.mxu0 0.0
      %331 = vmatpush1.msra.mxu0 %v250
      %332 = vmatprep.subr.mxu0 0.0
      %333 = vmatpush1.msra.mxu0 %v251
      %334 = vmatprep.subr.mxu0 0.0
      %335 = vmatpush1.msra.mxu0 %v252
      %336 = vmatprep.subr.mxu0 0.0
      %337 = vmatpush1.msra.mxu0 %v253
      %338 = vmatprep.subr.mxu0 0.0
      %339 = vmatpush1.msra.mxu0 %v254
      %340 = vmatprep.subr.mxu0 0.0
      %341 = vmatpush1.msra.mxu0 %v255
      %342 = vmatprep.subr.mxu0 0.0
      %343 = vmatpush1.msra.mxu0 %v256
      %344 = vmatprep.subr.mxu0 0.0
      %345 = vmatpush1.msra.mxu0 %v257
      %346 = vmatprep.subr.mxu0 0.0
      %347 = vmatpush1.msra.mxu0 %v258
      %348 = vmatprep.subr.mxu0 0.0
      %349 = vmatpush1.msra.mxu0 0.0
      %350 = vmatprep.subr.mxu0 0.0
      %351 = vmatpush1.msra.mxu0 0.0
      %352 = vmatprep.subr.mxu0 0.0
      %353 = vmatpush1.msra.mxu0 0.0
      %354 = vmatprep.subr.mxu0 0.0
      %355 = vmatpush1.msra.mxu0 0.0
      %356 = vmatprep.subr.mxu0 0.0
      %357 = vmatpush1.msra.mxu0 0.0
      %358 = vmatprep.subr.mxu0 0.0
      %359 = vmatpush1.msra.mxu0 0.0
      %360 = vmatprep.subr.mxu0 0.0
      %361 = vmatpush1.msra.mxu0 0.0
      %362 = vmatprep.subr.mxu0 0.0
      %363 = vmatpush1.msra.mxu0 0.0
      %364 = vmatprep.subr.mxu0 0.0
      %365 = vmatpush1.msra.mxu0 0.0
      %366 = vmatprep.subr.mxu0 0.0
      %367 = vmatpush1.msra.mxu0 0.0
      %368 = vmatprep.subr.mxu0 0.0
      %369 = vmatpush1.msra.mxu0 0.0
      %370 = vmatprep.subr.mxu0 0.0
      %371 = vmatpush1.msra.mxu0 0.0
      %372 = vmatprep.subr.mxu0 0.0
      %373 = vmatpush1.msra.mxu0 0.0
      %374 = vmatprep.subr.mxu0 0.0
      %375 = vmatpush1.msra.mxu0 0.0
      %376 = vmatprep.subr.mxu0 0.0
      %377 = vmatpush1.msra.mxu0 0.0
      %378 = vmatprep.subr.mxu0 0.0
      %379 = vmatpush1.msra.mxu0 0.0
      %380 = vmatprep.subr.mxu0 0.0
      %381 = vmatpush1.msra.mxu0 0.0
      %382 = vmatprep.subr.mxu0 0.0
      %383 = vmatpush1.msra.mxu0 0.0
      %384 = vmatprep.subr.mxu0 0.0
      %385 = vmatpush1.msra.mxu0 0.0
      %386 = vmatprep.subr.mxu0 0.0
      %387 = vmatpush1.msra.mxu0 0.0
      %388 = vmatprep.mubr.f32.mxu0 0.0
      %389 = vmatmul.mubr.f32.gmra.mrb[0].mxu0 %v268
      %v390 = vpop.f32.mrb[0].mxu0
      %v391 = vadd.f32 %v264, %v390
      %v392 = vpop.f32.mrb[0].mxu0
      %393 = vmatprep.mubr.f32.mxu0 0.0
      %394 = vmatmul.mubr.f32.gmra.mrb[0].mxu0 %v271
      %v395 = vpop.f32.mrb[0].mxu0
      %v396 = vadd.f32 %v264, %v395
      %v397 = vpop.f32.mrb[0].mxu0
      %398 = vmatprep.mubr.f32.mxu0 0.0
      %399 = vmatmul.mubr.f32.gmra.mrb[0].mxu0 %v274
      %v400 = vpop.f32.mrb[0].mxu0
      %v401 = vadd.f32 %v264, %v400
      %v402 = vpop.f32.mrb[0].mxu0
      %403 = vmatprep.mubr.f32.mxu0 0.0
      %404 = vmatmul.mubr.f32.gmra.mrb[0].mxu0 %v277
      %v405 = vpop.f32.mrb[0].mxu0
      %v406 = vadd.f32 %v264, %v405
      %v407 = vpop.f32.mrb[0].mxu0
      %408 = vmatprep.mubr.f32.mxu0 0.0
      %409 = vmatmul.mubr.f32.gmra.mrb[0].mxu0 %v280
      %v410 = vpop.f32.mrb[0].mxu0
      %v411 = vadd.f32 %v264, %v410
      %v412 = vpop.f32.mrb[0].mxu0
      %413 = vmatprep.mubr.f32.mxu0 0.0
      %414 = vmatmul.mubr.f32.gmra.mrb[0].mxu0 %v283
      %v415 = vpop.f32.mrb[0].mxu0
      %v416 = vadd.f32 %v264, %v415
      %v417 = vpop.f32.mrb[0].mxu0
      %418 = vmatprep.mubr.f32.mxu0 0.0
      %419 = vmatmul.mubr.f32.gmra.mrb[0].mxu0 %v286
      %v420 = vpop.f32.mrb[0].mxu0
      %v421 = vadd.f32 %v264, %v420
      %v422 = vpop.f32.mrb[0].mxu0
      %423 = vmatprep.mubr.f32.mxu0 0.0
      %424 = vmatmul.mubr.f32.gmra.mrb[0].mxu0 %v289
      %v425 = vpop.f32.mrb[0].mxu0
      %v426 = vadd.f32 %v264, %v425
      %v427 = vpop.f32.mrb[0].mxu0
      %428 = vmatprep.mubr.f32.mxu0 0.0
      %429 = vmatmul.mubr.f32.gmra.mrb[0].mxu0 %v292
      %v430 = vpop.f32.mrb[0].mxu0
      %v431 = vadd.f32 %v264, %v430
      %v432 = vpop.f32.mrb[0].mxu0
      %433 = vmatprep.mubr.f32.mxu0 0.0
      %434 = vmatmul.mubr.f32.gmra.mrb[0].mxu0 %v295
      %v435 = vpop.f32.mrb[0].mxu0
      %v436 = vadd.f32 %v264, %v435
      %v437 = vpop.f32.mrb[0].mxu0
      %438 = vmatprep.mubr.f32.mxu0 0.0
      %439 = vmatmul.mubr.f32.gmra.mrb[0].mxu0 %v298
      %v440 = vpop.f32.mrb[0].mxu0
      %v441 = vadd.f32 %v264, %v440
      %v442 = vpop.f32.mrb[0].mxu0
      %443 = vmatprep.mubr.f32.mxu0 0.0
      %444 = vmatmul.mubr.f32.gmra.mrb[0].mxu0 %v301
      %v445 = vpop.f32.mrb[0].mxu0
      %v446 = vadd.f32 %v264, %v445
      %v447 = vpop.f32.mrb[0].mxu0
      %448 = vmatprep.mubr.f32.mxu0 0.0
      %449 = vmatmul.mubr.f32.gmra.mrb[0].mxu0 %v304
      %v450 = vpop.f32.mrb[0].mxu0
      %v451 = vadd.f32 %v264, %v450
      %v452 = vpop.f32.mrb[0].mxu0
      %453 = vmatprep.mubr.f32.mxu0 0.0
      %454 = vmatmul.mubr.f32.gmra.mrb[0].mxu0 %v307
      %v455 = vpop.f32.mrb[0].mxu0
      %v456 = vadd.f32 %v264, %v455
      %v457 = vpop.f32.mrb[0].mxu0
      %458 = vmatprep.mubr.f32.mxu0 0.0
      %459 = vmatmul.mubr.f32.gmra.mrb[0].mxu0 %v310
      %v460 = vpop.f32.mrb[0].mxu0
      %v461 = vadd.f32 %v264, %v460
      %v462 = vpop.f32.mrb[0].mxu0
      %463 = vmatprep.mubr.f32.mxu0 0.0
      %464 = vmatmul.mubr.f32.gmra.mrb[0].mxu0 %v313
      %v465 = vpop.f32.mrb[0].mxu0
      %v466 = vadd.f32 %v264, %v465
      %v467 = vpop.f32.mrb[0].mxu0
      %468 = vmatprep.mubr.f32.mxu0 0.0
      %469 = vmatmul.mubr.f32.gmra.mrb[0].mxu0 %v316
      %v470 = vpop.f32.mrb[0].mxu0
      %v471 = vadd.f32 %v264, %v470
      %v472 = vpop.f32.mrb[0].mxu0
      %473 = vmatprep.mubr.f32.mxu0 0.0
      %474 = vmatmul.mubr.f32.gmra.mrb[0].mxu0 %v319
      %v475 = vpop.f32.mrb[0].mxu0
      %v476 = vadd.f32 %v264, %v475
      %v477 = vpop.f32.mrb[0].mxu0
      %478 = vmatprep.mubr.f32.mxu0 0.0
      %479 = vmatmul.mubr.f32.gmra.mrb[0].mxu0 %v322
      %v480 = vpop.f32.mrb[0].mxu0
      %v481 = vadd.f32 %v264, %v480
      %v482 = vpop.f32.mrb[0].mxu0
      %483 = vdwg.mxu0
      %v484 = vmax.f32 %v391, 0.0
      %v485 = vmax.f32 %v396, 0.0
      %v486 = vmax.f32 %v401, 0.0
      %v487 = vmax.f32 %v406, 0.0
      %v488 = vmax.f32 %v411, 0.0
      %v489 = vmax.f32 %v416, 0.0
      %v490 = vmax.f32 %v421, 0.0
      %v491 = vmax.f32 %v426, 0.0
      %v492 = vmax.f32 %v431, 0.0
      %v493 = vmax.f32 %v436, 0.0
      %v494 = vmax.f32 %v441, 0.0
      %v495 = vmax.f32 %v446, 0.0
      %v496 = vmax.f32 %v451, 0.0
      %v497 = vmax.f32 %v456, 0.0
      %v498 = vmax.f32 %v461, 0.0
      %v499 = vmax.f32 %v466, 0.0
      %v500 = vmax.f32 %v471, 0.0
      %v501 = vmax.f32 %v476, 0.0
      %v502 = vmax.f32 %v481, 0.0
      %v503 = vld [vmem:[%s3] sm:$0xff]
      %v504 = vld [vmem:[%s3 + $0x8] sm:$0xff]
      %v505 = vld [vmem:[%s3 + $0x10] sm:$0xff]
      %v506 = vld [vmem:[%s3 + $0x18] sm:$0xff]
      %v507 = vld [vmem:[%s4] sm:$0x1]
      %v509 = vlaneseq
      %v510 = vshrl.u32 %v509, 7
      %v511 = vsub.s32 0, %v510
      %v512 = vrot.slane %v507, %v511
      %vm514 = vcmask 261120
      %v516 = vsel %vm514, %v484, 0
      %v519 = vsel %vm514, %v485, 0
      %v522 = vsel %vm514, %v486, 0
      %v525 = vsel %vm514, %v487, 0
      %v528 = vsel %vm514, %v488, 0
      %v531 = vsel %vm514, %v489, 0
      %v534 = vsel %vm514, %v490, 0
      %v537 = vsel %vm514, %v491, 0
      %v540 = vsel %vm514, %v492, 0
      %v543 = vsel %vm514, %v493, 0
      %v546 = vsel %vm514, %v494, 0
      %v549 = vsel %vm514, %v495, 0
      %v552 = vsel %vm514, %v496, 0
      %v555 = vsel %vm514, %v497, 0
      %v558 = vsel %vm514, %v498, 0
      %v561 = vsel %vm514, %v499, 0
      %v564 = vsel %vm514, %v500, 0
      %v567 = vsel %vm514, %v501, 0
      %v570 = vsel %vm514, %v502, 0
      %572 = vmatprep.subr.mxu0 0.0
      %573 = vmatpush1.msra.mxu0 %v503
      %574 = vmatprep.subr.mxu0 0.0
      %575 = vmatpush1.msra.mxu0 %v504
      %576 = vmatprep.subr.mxu0 0.0
      %577 = vmatpush1.msra.mxu0 %v505
      %578 = vmatprep.subr.mxu0 0.0
      %579 = vmatpush1.msra.mxu0 %v506
      %580 = vmatprep.subr.mxu0 0.0
      %581 = vmatpush1.msra.mxu0 0.0
      %582 = vmatprep.subr.mxu0 0.0
      %583 = vmatpush1.msra.mxu0 0.0
      %584 = vmatprep.subr.mxu0 0.0
      %585 = vmatpush1.msra.mxu0 0.0
      %586 = vmatprep.subr.mxu0 0.0
      %587 = vmatpush1.msra.mxu0 0.0
      %588 = vmatprep.subr.mxu0 0.0
      %589 = vmatpush1.msra.mxu0 0.0
      %590 = vmatprep.subr.mxu0 0.0
      %591 = vmatpush1.msra.mxu0 0.0
      %592 = vmatprep.subr.mxu0 0.0
      %593 = vmatpush1.msra.mxu0 0.0
      %594 = vmatprep.subr.mxu0 0.0
      %595 = vmatpush1.msra.mxu0 0.0
      %596 = vmatprep.subr.mxu0 0.0
      %597 = vmatpush1.msra.mxu0 0.0
      %598 = vmatprep.subr.mxu0 0.0
      %599 = vmatpush1.msra.mxu0 0.0
      %600 = vmatprep.subr.mxu0 0.0
      %601 = vmatpush1.msra.mxu0 0.0
      %602 = vmatprep.subr.mxu0 0.0
      %603 = vmatpush1.msra.mxu0 0.0
      %604 = vmatprep.subr.mxu0 0.0
      %605 = vmatpush1.msra.mxu0 0.0
      %606 = vmatprep.subr.mxu0 0.0
      %607 = vmatpush1.msra.mxu0 0.0
      %608 = vmatprep.subr.mxu0 0.0
      %609 = vmatpush1.msra.mxu0 0.0
      %610 = vmatprep.subr.mxu0 0.0
      %611 = vmatpush1.msra.mxu0 0.0
      %612 = vmatprep.subr.mxu0 0.0
      %613 = vmatpush1.msra.mxu0 0.0
      %614 = vmatprep.subr.mxu0 0.0
      %615 = vmatpush1.msra.mxu0 0.0
      %616 = vmatprep.subr.mxu0 0.0
      %617 = vmatpush1.msra.mxu0 0.0
      %618 = vmatprep.subr.mxu0 0.0
      %619 = vmatpush1.msra.mxu0 0.0
      %620 = vmatprep.subr.mxu0 0.0
      %621 = vmatpush1.msra.mxu0 0.0
      %622 = vmatprep.subr.mxu0 0.0
      %623 = vmatpush1.msra.mxu0 0.0
      %624 = vmatprep.subr.mxu0 0.0
      %625 = vmatpush1.msra.mxu0 0.0
      %626 = vmatprep.subr.mxu0 0.0
      %627 = vmatpush1.msra.mxu0 0.0
      %628 = vmatprep.subr.mxu0 0.0
      %629 = vmatpush1.msra.mxu0 0.0
      %630 = vmatprep.subr.mxu0 0.0
      %631 = vmatpush1.msra.mxu0 0.0
      %632 = vmatprep.subr.mxu0 0.0
      %633 = vmatpush1.msra.mxu0 0.0
      %634 = vmatprep.subr.mxu0 0.0
      %635 = vmatpush1.msra.mxu0 0.0
      %636 = vmatprep.mubr.f32.mxu0 0.0
      %637 = vmatmul.mubr.f32.gmra.mrb[0].mxu0 %v516
      %v638 = vpop.f32.mrb[0].mxu0
      %v639 = vadd.f32 %v512, %v638
      %v640 = vpop.f32.mrb[0].mxu0
      %641 = vmatprep.mubr.f32.mxu0 0.0
      %642 = vmatmul.mubr.f32.gmra.mrb[0].mxu0 %v519
      %v643 = vpop.f32.mrb[0].mxu0
      %v644 = vadd.f32 %v512, %v643
      %v645 = vpop.f32.mrb[0].mxu0
      %646 = vmatprep.mubr.f32.mxu0 0.0
      %647 = vmatmul.mubr.f32.gmra.mrb[0].mxu0 %v522
      %v648 = vpop.f32.mrb[0].mxu0
      %v649 = vadd.f32 %v512, %v648
      %v650 = vpop.f32.mrb[0].mxu0
      %651 = vmatprep.mubr.f32.mxu0 0.0
      %652 = vmatmul.mubr.f32.gmra.mrb[0].mxu0 %v525
      %v653 = vpop.f32.mrb[0].mxu0
      %v654 = vadd.f32 %v512, %v653
      %v655 = vpop.f32.mrb[0].mxu0
      %656 = vmatprep.mubr.f32.mxu0 0.0
      %657 = vmatmul.mubr.f32.gmra.mrb[0].mxu0 %v528
      %v658 = vpop.f32.mrb[0].mxu0
      %v659 = vadd.f32 %v512, %v658
      %v660 = vpop.f32.mrb[0].mxu0
      %661 = vmatprep.mubr.f32.mxu0 0.0
      %662 = vmatmul.mubr.f32.gmra.mrb[0].mxu0 %v531
      %v663 = vpop.f32.mrb[0].mxu0
      %v664 = vadd.f32 %v512, %v663
      %v665 = vpop.f32.mrb[0].mxu0
      %666 = vmatprep.mubr.f32.mxu0 0.0
      %667 = vmatmul.mubr.f32.gmra.mrb[0].mxu0 %v534
      %v668 = vpop.f32.mrb[0].mxu0
      %v669 = vadd.f32 %v512, %v668
      %v670 = vpop.f32.mrb[0].mxu0
      %671 = vmatprep.mubr.f32.mxu0 0.0
      %672 = vmatmul.mubr.f32.gmra.mrb[0].mxu0 %v537
      %v673 = vpop.f32.mrb[0].mxu0
      %v674 = vadd.f32 %v512, %v673
      %v675 = vpop.f32.mrb[0].mxu0
      %676 = vmatprep.mubr.f32.mxu0 0.0
      %677 = vmatmul.mubr.f32.gmra.mrb[0].mxu0 %v540
      %v678 = vpop.f32.mrb[0].mxu0
      %v679 = vadd.f32 %v512, %v678
      %v680 = vpop.f32.mrb[0].mxu0
      %681 = vmatprep.mubr.f32.mxu0 0.0
      %682 = vmatmul.mubr.f32.gmra.mrb[0].mxu0 %v543
      %v683 = vpop.f32.mrb[0].mxu0
      %v684 = vadd.f32 %v512, %v683
      %v685 = vpop.f32.mrb[0].mxu0
      %686 = vmatprep.mubr.f32.mxu0 0.0
      %687 = vmatmul.mubr.f32.gmra.mrb[0].mxu0 %v546
      %v688 = vpop.f32.mrb[0].mxu0
      %v689 = vadd.f32 %v512, %v688
      %v690 = vpop.f32.mrb[0].mxu0
      %691 = vmatprep.mubr.f32.mxu0 0.0
      %692 = vmatmul.mubr.f32.gmra.mrb[0].mxu0 %v549
      %v693 = vpop.f32.mrb[0].mxu0
      %v694 = vadd.f32 %v512, %v693
      %v695 = vpop.f32.mrb[0].mxu0
      %696 = vmatprep.mubr.f32.mxu0 0.0
      %697 = vmatmul.mubr.f32.gmra.mrb[0].mxu0 %v552
      %v698 = vpop.f32.mrb[0].mxu0
      %v699 = vadd.f32 %v512, %v698
      %v700 = vpop.f32.mrb[0].mxu0
      %701 = vmatprep.mubr.f32.mxu0 0.0
      %702 = vmatmul.mubr.f32.gmra.mrb[0].mxu0 %v555
      %v703 = vpop.f32.mrb[0].mxu0
      %v704 = vadd.f32 %v512, %v703
      %v705 = vpop.f32.mrb[0].mxu0
      %706 = vmatprep.mubr.f32.mxu0 0.0
      %707 = vmatmul.mubr.f32.gmra.mrb[0].mxu0 %v558
      %v708 = vpop.f32.mrb[0].mxu0
      %v709 = vadd.f32 %v512, %v708
      %v710 = vpop.f32.mrb[0].mxu0
      %711 = vmatprep.mubr.f32.mxu0 0.0
      %712 = vmatmul.mubr.f32.gmra.mrb[0].mxu0 %v561
      %v713 = vpop.f32.mrb[0].mxu0
      %v714 = vadd.f32 %v512, %v713
      %v715 = vpop.f32.mrb[0].mxu0
      %716 = vmatprep.mubr.f32.mxu0 0.0
      %717 = vmatmul.mubr.f32.gmra.mrb[0].mxu0 %v564
      %v718 = vpop.f32.mrb[0].mxu0
      %v719 = vadd.f32 %v512, %v718
      %v720 = vpop.f32.mrb[0].mxu0
      %721 = vmatprep.mubr.f32.mxu0 0.0
      %722 = vmatmul.mubr.f32.gmra.mrb[0].mxu0 %v567
      %v723 = vpop.f32.mrb[0].mxu0
      %v724 = vadd.f32 %v512, %v723
      %v725 = vpop.f32.mrb[0].mxu0
      %726 = vmatprep.mubr.f32.mxu0 0.0
      %727 = vmatmul.mubr.f32.gmra.mrb[0].mxu0 %v570
      %v728 = vpop.f32.mrb[0].mxu0
      %v729 = vadd.f32 %v512, %v728
      %v730 = vpop.f32.mrb[0].mxu0
      %731 = vdwg.mxu0
      %v732 = vmax.f32 %v639, 0.0
      %v733 = vmax.f32 %v644, 0.0
      %v734 = vmax.f32 %v649, 0.0
      %v735 = vmax.f32 %v654, 0.0
      %v736 = vmax.f32 %v659, 0.0
      %v737 = vmax.f32 %v664, 0.0
      %v738 = vmax.f32 %v669, 0.0
      %v739 = vmax.f32 %v674, 0.0
      %v740 = vmax.f32 %v679, 0.0
      %v741 = vmax.f32 %v684, 0.0
      %v742 = vmax.f32 %v689, 0.0
      %v743 = vmax.f32 %v694, 0.0
      %v744 = vmax.f32 %v699, 0.0
      %v745 = vmax.f32 %v704, 0.0
      %v746 = vmax.f32 %v709, 0.0
      %v747 = vmax.f32 %v714, 0.0
      %v748 = vmax.f32 %v719, 0.0
      %v749 = vmax.f32 %v724, 0.0
      %v750 = vmax.f32 %v729, 0.0
      %vm751 = vcmask 523264
      %752 = vst.msk [vmem:[%s226] sm:$0xff] %vm751, %v732
      %753 = vst.msk [vmem:[%s226 + $0x8] sm:$0xff] %vm751, %v733
      %754 = vst.msk [vmem:[%s226 + $0x10] sm:$0xff] %vm751, %v734
      %755 = vst.msk [vmem:[%s226 + $0x18] sm:$0xff] %vm751, %v735
      %756 = vst.msk [vmem:[%s226 + $0x20] sm:$0xff] %vm751, %v736
      %757 = vst.msk [vmem:[%s226 + $0x28] sm:$0xff] %vm751, %v737
      %758 = vst.msk [vmem:[%s226 + $0x30] sm:$0xff] %vm751, %v738
      %759 = vst.msk [vmem:[%s226 + $0x38] sm:$0xff] %vm751, %v739
      %760 = vst.msk [vmem:[%s226 + $0x40] sm:$0xff] %vm751, %v740
      %761 = vst.msk [vmem:[%s226 + $0x48] sm:$0xff] %vm751, %v741
      %762 = vst.msk [vmem:[%s226 + $0x50] sm:$0xff] %vm751, %v742
      %763 = vst.msk [vmem:[%s226 + $0x58] sm:$0xff] %vm751, %v743
      %764 = vst.msk [vmem:[%s226 + $0x60] sm:$0xff] %vm751, %v744
      %765 = vst.msk [vmem:[%s226 + $0x68] sm:$0xff] %vm751, %v745
      %766 = vst.msk [vmem:[%s226 + $0x70] sm:$0xff] %vm751, %v746
      %767 = vst.msk [vmem:[%s226 + $0x78] sm:$0xff] %vm751, %v747
      %768 = vst.msk [vmem:[%s226 + $0x80] sm:$0xff] %vm751, %v748
      %769 = vst.msk [vmem:[%s226 + $0x88] sm:$0xff] %vm751, %v749
      %770 = vst.msk [vmem:[%s226 + $0x90] sm:$0xff] %vm751, %v750
      %s771 = smul.u32 19, %s16
      %p772 = scmp.lt.s32.totalorder %s771, 37
      %s773 = scalar_select %p772, %s771, 37
      %s774 = smul.addr %s773, 8
      %s775 = scalar_lea.vmem %s5, %s774
      // Predicated region
      $region41: #{gnn_forward.1} parent=39 // pred_check
        %p776 = pneg %p144
      $region42: #{gnn_forward.1} parent=39 // pred_check_branch
        %778 = sbr.rel (%p776) target = $region44
      $region43: #{gnn_forward.1} parent=39 // pred_region
        %s779 = smul.u32 19, %s16
      $region44: #{gnn_forward.1} parent=39 // pred_fallthru
        _
    $region40: #{gnn_forward.1} parent=5 // pred_fallthru
      _
    %p780 = scmp.le.s32.totalorder 2, %s11
    // Predicated region
    $region45: #{gnn_forward.1} parent=5 // pred_check
      %p781 = pneg %p780
    $region46: #{gnn_forward.1} parent=5 // pred_check_branch
      %783 = sbr.rel (%p781) target = $region48
    $region47: #{gnn_forward.1} parent=5 // pred_region
      %s784 = ssub.s32 %s11, 2
      // Predicated region
      $region49: #{gnn_forward.1} parent=47 // pred_check
        %p785 = pneg %p150
      $region50: #{gnn_forward.1} parent=47 // pred_check_branch
        %787 = sbr.rel (%p785) target = $region52
      $region51: #{gnn_forward.1} parent=47 // pred_region
        %s788 = smul.u32 19, %s17
        %p789 = scmp.lt.s32.totalorder %s788, 37
        %s790 = scalar_select %p789, %s788, 37
        %s791 = smul.addr %s790, 8
        %s792 = scalar_lea.vmem %s5, %s791
      $region52: #{gnn_forward.1} parent=47 // pred_fallthru
        _
    $region48: #{gnn_forward.1} parent=5 // pred_fallthru
      _
  $region6: #{gnn_forward.1} parent=0 // loop_footer
    %s15 = sadd.s32 1, %s11
  $region7: #{gnn_forward.1} parent=0 // loop_footer_branch
    %10 = sbr.rel target = $region3
  $region8: #{gnn_forward.1} parent=0 // loop_exit
    _

</llo_original>
